<compile_context>
chip_gen: v5e
topology: v5e:2x2
jax: 0.10.0
libtpu: 0.0.40
codegen_flags: <defaults>
</compile_context>

<pallas_src>
import functools

import jax
import jax.numpy as jnp
from jax.experimental import pallas as pl
from jax.experimental.pallas import tpu as pltpu


def dgm_kernel(xs_ref, s_ref, w1_ref, b1_ref, whs_ref, out_ref, *, dim_S):
    xs = xs_ref[...]                 # (tile_b, dim_x + dim_S), compute dtype
    s = s_ref[...]                   # (tile_b, dim_S), f32 (used in the combine)

    # MXU push #1: fused [Z | G | R | x-part-of-H] pre-activations.
    # N = 4*dim_S is lane-dense; bias (incl. bh) added exactly once.
    pre = (jnp.dot(xs, w1_ref[...], preferred_element_type=jnp.float32)
           + b1_ref[...])

    z = jnp.tanh(pre[:, 0 * dim_S:1 * dim_S])
    g = jnp.tanh(pre[:, 1 * dim_S:2 * dim_S])
    r = jnp.tanh(pre[:, 2 * dim_S:3 * dim_S])

    # MXU push #2: (S*R) @ Whs completes H's pre-activation.
    sr = (s * r).astype(whs_ref.dtype)
    h = jnp.tanh(pre[:, 3 * dim_S:4 * dim_S]
                 + jnp.dot(sr, whs_ref[...], preferred_element_type=jnp.float32))

    out_ref[...] = (1.0 - g) * h + z * s


def _pack_params(params, dim_x, dim_S, compute_dtype):
    """Pack per-gate (w_x, w_s, b) into W1 (dim_in, 4*dim_S), b1 (1, 4*dim_S),
    and Whs (dim_S, dim_S).  Column blocks of W1: [Z | G | R | H_x-part]."""
    cols, biases = [], []
    for gname in ("Z", "G", "R"):
        w_x, w_s, b = params[gname]
        cols.append(jnp.concatenate([w_x, w_s], axis=0))
        biases.append(b)
    wh_x, wh_s, bh = params["H"]
    cols.append(jnp.concatenate(
        [wh_x, jnp.zeros((dim_S, dim_S), wh_x.dtype)], axis=0))
    biases.append(bh)

    w1 = jnp.concatenate(cols, axis=1).astype(compute_dtype)    # (dim_in, 4*dim_S)
    b1 = jnp.concatenate(biases, axis=1).astype(jnp.float32)    # (1, 4*dim_S)
    whs = wh_s.astype(compute_dtype)                            # (dim_S, dim_S)
    return w1, b1, whs


def dgm_layer(x, S, params, *, tile_b=None, compute_dtype=jnp.float32):
    B, dim_x = x.shape
    dim_S = S.shape[1]
    dim_in = dim_x + dim_S

    w1, b1, whs = _pack_params(params, dim_x, dim_S, compute_dtype)
    xs = jnp.concatenate([x, S], axis=1).astype(compute_dtype)
    s32 = S.astype(jnp.float32)

    itemsize = jnp.dtype(compute_dtype).itemsize

    # ---- batch tile choice: ~4 MiB of activations per pipeline buffer so
    # 2x double-buffering stays inside v5e's 16 MiB scoped-VMEM default
    # (and far inside v6e / v7x limits).
    if tile_b is None:
        per_row = dim_in * itemsize + 2 * dim_S * 4      # xs + S + out rows
        tile_b = (4 << 20) // max(per_row, 1)
    if B % 8 == 0:
        tile_b = max(8, min((int(tile_b) // 8) * 8, B))
    else:
        tile_b = B   # sublane-odd batch: single full block (legal: equals full dim)

    grid = (pl.cdiv(B, tile_b),)

    # ---- explicit VMEM budget (double-buffered activations + resident weights)
    weight_bytes = w1.size * itemsize + b1.size * 4 + whs.size * itemsize
    act_bytes = tile_b * (dim_in * itemsize + dim_S * 4 + dim_S * 4)
    vmem_limit = int(min(max(4 * (act_bytes + weight_bytes) + (2 << 20), 8 << 20),
                         64 << 20))

    kern = functools.partial(dgm_kernel, dim_S=dim_S)

    return pl.pallas_call(
        kern,
        out_shape=jax.ShapeDtypeStruct((B, dim_S), jnp.float32),
        grid_spec=pltpu.PrefetchScalarGridSpec(
            num_scalar_prefetch=0,
            grid=grid,
            in_specs=[
                pl.BlockSpec((tile_b, dim_in), lambda i: (i, 0)),      # xs  (pipelined)
                pl.BlockSpec((tile_b, dim_S), lambda i: (i, 0)),       # S   (pipelined)
                pl.BlockSpec((dim_in, 4 * dim_S), lambda i: (0, 0)),   # W1  (resident)
                pl.BlockSpec((1, 4 * dim_S), lambda i: (0, 0)),        # b1  (resident)
                pl.BlockSpec((dim_S, dim_S), lambda i: (0, 0)),        # Whs (resident)
            ],
            out_specs=pl.BlockSpec((tile_b, dim_S), lambda i: (i, 0)),
        ),
        compiler_params=pltpu.CompilerParams(
            dimension_semantics=("parallel",),   # megacore-shards batch tiles on v7x
            vmem_limit_bytes=vmem_limit,
        ),
    )(xs, s32, w1, b1, whs)


def init_params(key, dim_x, dim_S):
    """Deterministic synthetic init. PyTorch Linear weight (out, in) is stored
    transposed (in, out) and split into x-rows and S-rows."""
    params = {}
    for i, gname in enumerate(("Z", "G", "R", "H")):
        kx, ks, kb = jax.random.split(jax.random.fold_in(key, i), 3)
        bound = 1.0 / jnp.sqrt(dim_x + dim_S)
        w_x = jax.random.uniform(kx, (dim_x, dim_S), jnp.float32, -bound, bound)
        w_s = jax.random.uniform(ks, (dim_S, dim_S), jnp.float32, -bound, bound)
        b = jax.random.uniform(kb, (1, dim_S), jnp.float32, -bound, bound)
        params[gname] = (w_x, w_s, b)
    return params


def dgm_reference(x, S, params):
    """Pure-JAX reference mirroring the PyTorch forward exactly."""
    xs = jnp.concatenate([x, S], axis=1)

    def gate(gname, inp):
        w_x, w_s, b = params[gname]
        w = jnp.concatenate([w_x, w_s], axis=0)
        return jnp.tanh(inp @ w + b)

    z = gate("Z", xs)
    g = gate("G", xs)
    r = gate("R", xs)
    h = gate("H", jnp.concatenate([x, S * r], axis=1))
    return (1.0 - g) * h + z * S


if __name__ == "__main__":
    B, dim_x, dim_S = 8, 16, 32
    key = jax.random.PRNGKey(0)
    kx, ks, kp = jax.random.split(key, 3)
    x = jax.random.normal(kx, (B, dim_x), jnp.float32)
    S = jax.random.normal(ks, (B, dim_S), jnp.float32)
    params = init_params(kp, dim_x, dim_S)

    out = dgm_layer(x, S, params)          # f32 path for validation
    jax.block_until_ready(out)

    ref = dgm_reference(x, S, params)
    assert out.shape == (B, dim_S)
    err = float(jnp.max(jnp.abs(out - ref)))
    assert jnp.allclose(out, ref, atol=1e-4, rtol=1e-4), err
    print("KERNEL_OK")
</pallas_src>

<mosaic_0001>
module attributes {stable_mosaic.version = 11 : i64} {
  func.func @dgm_kernel(%arg0: i32, %arg1: memref<8x48xf32, #tpu.memory_space<vmem>>, %arg2: memref<8x32xf32, #tpu.memory_space<vmem>>, %arg3: memref<48x128xf32, #tpu.memory_space<vmem>>, %arg4: memref<1x128xf32, #tpu.memory_space<vmem>>, %arg5: memref<32x32xf32, #tpu.memory_space<vmem>>, %arg6: memref<8x32xf32, #tpu.memory_space<vmem>>) attributes {dimension_semantics = [#tpu.dimension_semantics<parallel>], iteration_bounds = array<i64: 1>, scalar_prefetch = 0 : i64, scratch_operands = 0 : i64, tpu.core_type = #tpu.core_type<tc>, window_params = [{transform_indices = @transform_0, window_bounds = array<i64: 8, 48>}, {transform_indices = @transform_1, window_bounds = array<i64: 8, 32>}, {pipeline_mode = #tpu.pipeline_mode<synchronous>, transform_indices = @transform_2, window_bounds = array<i64: 48, 128>}, {pipeline_mode = #tpu.pipeline_mode<synchronous>, transform_indices = @transform_3, window_bounds = array<i64: 1, 128>}, {pipeline_mode = #tpu.pipeline_mode<synchronous>, transform_indices = @transform_4, window_bounds = array<i64: 32, 32>}, {transform_indices = @transform_5, window_bounds = array<i64: 8, 32>}]} {
    %c0 = arith.constant 0 : index
    %c0_0 = arith.constant 0 : index
    %0 = vector.load %arg1[%c0, %c0_0] : memref<8x48xf32, #tpu.memory_space<vmem>>, vector<8x48xf32>
    %c0_1 = arith.constant 0 : index
    %c0_2 = arith.constant 0 : index
    %1 = vector.load %arg2[%c0_1, %c0_2] : memref<8x32xf32, #tpu.memory_space<vmem>>, vector<8x32xf32>
    %c0_3 = arith.constant 0 : index
    %c0_4 = arith.constant 0 : index
    %2 = vector.load %arg3[%c0_3, %c0_4] : memref<48x128xf32, #tpu.memory_space<vmem>>, vector<48x128xf32>
    %cst = arith.constant dense<0.000000e+00> : vector<8x128xf32>
    %3 = tpu.matmul %0, %2, %cst {dimension_numbers = #tpu.dot_dimension_numbers<[1], [0], [0], [1], [0, 0, 1, 1], [], []>} : vector<8x48xf32>, vector<48x128xf32>, vector<8x128xf32> -> vector<8x128xf32>
    %c0_5 = arith.constant 0 : index
    %c0_6 = arith.constant 0 : index
    %4 = vector.load %arg4[%c0_5, %c0_6] : memref<1x128xf32, #tpu.memory_space<vmem>>, vector<1x128xf32>
    %5 = vector.broadcast %4 : vector<1x128xf32> to vector<8x128xf32>
    %6 = arith.addf %3, %5 : vector<8x128xf32>
    %7 = vector.extract_strided_slice %6 {offsets = [0, 0], sizes = [8, 32], strides = [1, 1]} : vector<8x128xf32> to vector<8x32xf32>
    %8 = math.tanh %7 : vector<8x32xf32>
    %9 = vector.extract_strided_slice %6 {offsets = [0, 32], sizes = [8, 32], strides = [1, 1]} : vector<8x128xf32> to vector<8x32xf32>
    %10 = math.tanh %9 : vector<8x32xf32>
    %11 = vector.extract_strided_slice %6 {offsets = [0, 64], sizes = [8, 32], strides = [1, 1]} : vector<8x128xf32> to vector<8x32xf32>
    %12 = math.tanh %11 : vector<8x32xf32>
    %13 = arith.mulf %1, %12 : vector<8x32xf32>
    %14 = vector.extract_strided_slice %6 {offsets = [0, 96], sizes = [8, 32], strides = [1, 1]} : vector<8x128xf32> to vector<8x32xf32>
    %c0_7 = arith.constant 0 : index
    %c0_8 = arith.constant 0 : index
    %15 = vector.load %arg5[%c0_7, %c0_8] : memref<32x32xf32, #tpu.memory_space<vmem>>, vector<32x32xf32>
    %cst_9 = arith.constant dense<0.000000e+00> : vector<8x32xf32>
    %16 = tpu.matmul %13, %15, %cst_9 {dimension_numbers = #tpu.dot_dimension_numbers<[1], [0], [0], [1], [0, 0, 1, 1], [], []>} : vector<8x32xf32>, vector<32x32xf32>, vector<8x32xf32> -> vector<8x32xf32>
    %17 = arith.addf %14, %16 : vector<8x32xf32>
    %18 = math.tanh %17 : vector<8x32xf32>
    %cst_10 = arith.constant 1.000000e+00 : f32
    %19 = vector.broadcast %cst_10 : f32 to vector<8x32xf32>
    %20 = arith.subf %19, %10 : vector<8x32xf32>
    %21 = arith.mulf %20, %18 : vector<8x32xf32>
    %22 = arith.mulf %8, %1 : vector<8x32xf32>
    %23 = arith.addf %21, %22 : vector<8x32xf32>
    %c0_11 = arith.constant 0 : index
    %c0_12 = arith.constant 0 : index
    %24 = vector.load %arg6[%c0_11, %c0_12] : memref<8x32xf32, #tpu.memory_space<vmem>>, vector<8x32xf32>
    tpu.vector_store %arg6[%c0_11, %c0_12], %23 {strides = array<i32>} : memref<8x32xf32, #tpu.memory_space<vmem>>, vector<8x32xf32>,
    return
  }
  func.func @transform_0(%arg0: i32) -> (i32, i32) {
    %c0_i32 = arith.constant 0 : i32
    %c0_i32_0 = arith.constant 0 : i32
    return %arg0, %c0_i32 : i32, i32
  }
  func.func @transform_1(%arg0: i32) -> (i32, i32) {
    %c0_i32 = arith.constant 0 : i32
    %c0_i32_0 = arith.constant 0 : i32
    return %arg0, %c0_i32 : i32, i32
  }
  func.func @transform_2(%arg0: i32) -> (i32, i32) {
    %c0_i32 = arith.constant 0 : i32
    %c0_i32_0 = arith.constant 0 : i32
    %c0_i32_1 = arith.constant 0 : i32
    return %c0_i32, %c0_i32_0 : i32, i32
  }
  func.func @transform_3(%arg0: i32) -> (i32, i32) {
    %c0_i32 = arith.constant 0 : i32
    %c0_i32_0 = arith.constant 0 : i32
    %c0_i32_1 = arith.constant 0 : i32
    return %c0_i32, %c0_i32_0 : i32, i32
  }
  func.func @transform_4(%arg0: i32) -> (i32, i32) {
    %c0_i32 = arith.constant 0 : i32
    %c0_i32_0 = arith.constant 0 : i32
    %c0_i32_1 = arith.constant 0 : i32
    return %c0_i32, %c0_i32_0 : i32, i32
  }
  func.func @transform_5(%arg0: i32) -> (i32, i32) {
    %c0_i32 = arith.constant 0 : i32
    %c0_i32_0 = arith.constant 0 : i32
    return %arg0, %c0_i32 : i32, i32
  }
}

</mosaic_0001>

<llo_original>
// kernel: tpu_custom_call.1
$region0: #{tpu_custom_call.1}
  #allocation0 [shape = 'u32[]', space=smem, size = 0x4, offset = 0x4, fixed_abs, tag = 'smem constant byte address 0x4 - core index']
  #allocation1 [shape = 'u32[72,128]{1,0:T(1,128)}', space=vmem, size = 0x9000, scoped, tag = 'internal scratch']
  %s0 = inlined_call_operand.hbm [shape: f32[8,48], index: 0, kind: input, shape index: {}]
  %s1 = inlined_call_operand.hbm [shape: f32[8,32], index: 1, kind: input, shape index: {}]
  %s2 = inlined_call_operand.hbm [shape: f32[48,128], index: 2, kind: input, shape index: {}]
  %s3 = inlined_call_operand.vmem [shape: f32[1,128], index: 3, kind: input, shape index: {}]
  %s4 = inlined_call_operand.hbm [shape: f32[32,32], index: 4, kind: input, shape index: {}]
  %s5 = inlined_call_operand.hbm [shape: f32[8,32], index: 5, kind: output, shape index: {}]
  %s6 = sld [smem:[#allocation0]]
  $region46: #{tpu_custom_call.1} parent=0
    _
  %s8 = ssub.s32 1, %s6
  %s9 = scalar_select 0, %s8, %s6
  $region1: #{tpu_custom_call.1} parent=0
    #allocation2 [shape = 'u8[4096]{0}', space=vmem, size = 0x1000, scoped, tag = 'input window, operand 0, single buffered']
    #allocation3 [shape = 's32[1]{0}', space=sflag, size = 0x4, scoped, tag = 'scoped memory for tpu_custom_call.1']
    #allocation4 [shape = 's32[1]{0}', space=sflag, size = 0x4, scoped, tag = 'scoped memory for tpu_custom_call.1']
    #allocation5 [shape = 'u8[4096]{0}', space=vmem, size = 0x1000, scoped, tag = 'input window, operand 1, single buffered']
    #allocation6 [shape = 's32[1]{0}', space=sflag, size = 0x4, scoped, tag = 'scoped memory for tpu_custom_call.1']
    #allocation7 [shape = 'u8[24576]{0}', space=vmem, size = 0x6000, scoped, tag = 'input window, operand 2, single buffered']
    #allocation8 [shape = 'u8[16384]{0}', space=vmem, size = 0x4000, scoped, tag = 'input window, operand 4, single buffered']
    #allocation9 [shape = 's32[1]{0}', space=sflag, size = 0x4, scoped, tag = 'scoped memory for tpu_custom_call.1']
    #allocation10 [shape = 'u8[4096]{0}', space=vmem, size = 0x1000, scoped, tag = 'output window, operand 0, single buffered']
    %10 = vsyncpa [#allocation3], 0
    %11 = vsyncpa [#allocation6], 0
    %12 = vsyncpa [#allocation9], 0
    %13 = vsyncpa [#allocation4], 0
    // Predicated region
    $region2: #{tpu_custom_call.1} parent=1 // pred_check
      _
    $region3: #{tpu_custom_call.1} parent=1 // pred_check_branch
      %15 = sbr.rel (0) target = $region5
    $region4: #{tpu_custom_call.1} parent=1 // pred_region
      %17 = vsyncadd [#allocation3], 0
      %s19 = sshll.u32 %s0, 4
      %s20 = int_to_ptr.hbm [resolvable:$true] %s19
      %s21 = sshll.u32 [#allocation2], 4
      %s22 = int_to_ptr.vmem [resolvable:$true] %s21
      %24 = dma.hbm_to_vmem [thread:$0]  %s20, 128, %s22, [#allocation3]
    $region5: #{tpu_custom_call.1} parent=1 // pred_fallthru
      _
    // Predicated region
    $region6: #{tpu_custom_call.1} parent=1 // pred_check
      _
    $region7: #{tpu_custom_call.1} parent=1 // pred_check_branch
      %26 = sbr.rel (0) target = $region9
    $region8: #{tpu_custom_call.1} parent=1 // pred_region
      %28 = vsyncadd [#allocation6], 0
      %s30 = sshll.u32 %s1, 4
      %s31 = int_to_ptr.hbm [resolvable:$true] %s30
      %s32 = sshll.u32 [#allocation5], 4
      %s33 = int_to_ptr.vmem [resolvable:$true] %s32
      %35 = dma.hbm_to_vmem [thread:$0]  %s31, 128, %s33, [#allocation6]
    $region9: #{tpu_custom_call.1} parent=1 // pred_fallthru
      _
    // Predicated region
    $region10: #{tpu_custom_call.1} parent=1 // pred_check
      _
    $region11: #{tpu_custom_call.1} parent=1 // pred_check_branch
      %37 = sbr.rel (0) target = $region13
    $region12: #{tpu_custom_call.1} parent=1 // pred_region
      %39 = vsyncadd [#allocation6], 0
      %s40 = sshll.u32 %s2, 4
      %s41 = int_to_ptr.hbm [resolvable:$true] %s40
      %s42 = sshll.u32 [#allocation7], 4
      %s43 = int_to_ptr.vmem [resolvable:$true] %s42
      %48 = dma.hbm_to_vmem [thread:$0]  %s41, 768, %s43, [#allocation6], 128, 128, 8
    $region13: #{tpu_custom_call.1} parent=1 // pred_fallthru
      _
    // Predicated region
    $region14: #{tpu_custom_call.1} parent=1 // pred_check
      _
    $region15: #{tpu_custom_call.1} parent=1 // pred_check_branch
      %50 = sbr.rel (0) target = $region17
    $region16: #{tpu_custom_call.1} parent=1 // pred_region
      _
    $region17: #{tpu_custom_call.1} parent=1 // pred_fallthru
      _
    // Predicated region
    $region18: #{tpu_custom_call.1} parent=1 // pred_check
      _
    $region19: #{tpu_custom_call.1} parent=1 // pred_check_branch
      %52 = sbr.rel (0) target = $region21
    $region20: #{tpu_custom_call.1} parent=1 // pred_region
      %54 = vsyncadd [#allocation9], 0
      %s55 = sshll.u32 %s4, 4
      %s56 = int_to_ptr.hbm [resolvable:$true] %s55
      %s57 = sshll.u32 [#allocation8], 4
      %s58 = int_to_ptr.vmem [resolvable:$true] %s57
      %63 = dma.hbm_to_vmem [thread:$0]  %s56, 512, %s58, [#allocation9], 128, 128, 8
    $region21: #{tpu_custom_call.1} parent=1 // pred_fallthru
      _
    // Predicated region
    $region22: #{tpu_custom_call.1} parent=1 // pred_check
      _
    $region23: #{tpu_custom_call.1} parent=1 // pred_check_branch
      %65 = sbr.rel (0) target = $region25
    $region24: #{tpu_custom_call.1} parent=1 // pred_region
      %67 = dma.done [#allocation3], 128
    $region25: #{tpu_custom_call.1} parent=1 // pred_fallthru
      _
    // Predicated region
    $region26: #{tpu_custom_call.1} parent=1 // pred_check
      _
    $region27: #{tpu_custom_call.1} parent=1 // pred_check_branch
      %69 = sbr.rel (0) target = $region29
    $region28: #{tpu_custom_call.1} parent=1 // pred_region
      %71 = dma.done [#allocation6], 128
    $region29: #{tpu_custom_call.1} parent=1 // pred_fallthru
      _
    // Predicated region
    $region30: #{tpu_custom_call.1} parent=1 // pred_check
      _
    $region31: #{tpu_custom_call.1} parent=1 // pred_check_branch
      %73 = sbr.rel (0) target = $region33
    $region32: #{tpu_custom_call.1} parent=1 // pred_region
      %75 = dma.done [#allocation6], 768
    $region33: #{tpu_custom_call.1} parent=1 // pred_fallthru
      _
    // Predicated region
    $region34: #{tpu_custom_call.1} parent=1 // pred_check
      _
    $region35: #{tpu_custom_call.1} parent=1 // pred_check_branch
      %77 = sbr.rel (0) target = $region37
    $region36: #{tpu_custom_call.1} parent=1 // pred_region
      %79 = dma.done [#allocation9], 512
    $region37: #{tpu_custom_call.1} parent=1 // pred_fallthru
      _
    %v80 = vld [vmem:[#allocation2] sm:$0xff]
    %v81 = vld [vmem:[#allocation5] sm:$0xff]
    %v82 = vld [vmem:[#allocation7] sm:$0xff]
    %v83 = vld [vmem:[#allocation7 + $0x8] sm:$0xff]
    %v84 = vld [vmem:[#allocation7 + $0x10] sm:$0xff]
    %v85 = vld [vmem:[#allocation7 + $0x18] sm:$0xff]
    %v86 = vld [vmem:[#allocation7 + $0x20] sm:$0xff]
    %v87 = vld [vmem:[#allocation7 + $0x28] sm:$0xff]
    %v88 = vld [vmem:[%s3] sm:$0x1]
    %v90 = vperm.slane %v88, 0
    %vm92 = vcmask 392192
    %v94 = vsel %vm92, %v80, 0
    %96 = vmatpush.msra.mxu0 0.0
    %97 = vmatpush.msra.mxu0 0.0
    %98 = vmatpush.msra.mxu0 0.0
    %99 = vmatpush.msra.mxu0 0.0
    %100 = vmatpush.msra.mxu0 0.0
    %101 = vmatpush.msra.mxu0 0.0
    %102 = vmatpush.msra.mxu0 0.0
    %103 = vmatpush.msra.mxu0 0.0
    %104 = vmatpush.msra.mxu0 0.0
    %105 = vmatpush.msra.mxu0 0.0
    %106 = vmatpush.msra.mxu0 %v87
    %107 = vmatpush.msra.mxu0 %v86
    %108 = vmatpush.msra.mxu0 %v85
    %109 = vmatpush.msra.mxu0 %v84
    %110 = vmatpush.msra.mxu0 %v83
    %111 = vmatpush.msra.mxu0 %v82
    %112 = vmatmul.f32.gmra.mxu0 %v94
    %v113 = vpop.f32.mrf.mxu0
    %v114 = vadd.f32 %v90, %v113
    %115 = vdwg.mxu0
    %v116 = vtanh.pop %v114
    %118 = vrot.lane.b32.xlu0 %v116, 64
    %v119 = vpop.permute.xlu0 %118
    %v121 = vmul.f32 %v81, %v119
    %v122 = vld [vmem:[#allocation8] sm:$0xff]
    %v123 = vld [vmem:[#allocation8 + $0x8] sm:$0xff]
    %v124 = vld [vmem:[#allocation8 + $0x10] sm:$0xff]
    %v125 = vld [vmem:[#allocation8 + $0x18] sm:$0xff]
    %vm126 = vcmask 261120
    %v128 = vsel %vm126, %v121, 0
    %130 = vmatpush.msra.mxu0 0.0
    %131 = vmatpush.msra.mxu0 0.0
    %132 = vmatpush.msra.mxu0 0.0
    %133 = vmatpush.msra.mxu0 0.0
    %134 = vmatpush.msra.mxu0 0.0
    %135 = vmatpush.msra.mxu0 0.0
    %136 = vmatpush.msra.mxu0 0.0
    %137 = vmatpush.msra.mxu0 0.0
    %138 = vmatpush.msra.mxu0 0.0
    %139 = vmatpush.msra.mxu0 0.0
    %140 = vmatpush.msra.mxu0 0.0
    %141 = vmatpush.msra.mxu0 0.0
    %142 = vmatpush.msra.mxu0 %v125
    %143 = vmatpush.msra.mxu0 %v124
    %144 = vmatpush.msra.mxu0 %v123
    %145 = vmatpush.msra.mxu0 %v122
    %146 = vmatmul.f32.gmra.mxu0 %v128
    %v147 = vpop.f32.mrf.mxu0
    %v148 = vadd.f32 0.0, %v147
    %149 = vdwg.mxu0
    %151 = vrot.lane.b32.xlu0 %v148, 96
    %v152 = vpop.permute.xlu0 %151
    %v154 = vadd.f32 %v114, %v152
    %v155 = vtanh.pop %v154
    %v156 = vsub.f32 1.0, %v116
    %158 = vrot.lane.b32.xlu0 %v155, 64
    %v159 = vpop.permute.xlu0 %158
    %v161 = vmul.f32 %v156, %v159
    %v162 = vmul.f32 %v116, %v81
    %164 = vrot.lane.b32.xlu0 %v162, 32
    %v165 = vpop.permute.xlu0 %164
    %v167 = vadd.f32 %v161, %v165
    %169 = vrot.lane.b32.xlu0 %v167, 96
    %v170 = vpop.permute.xlu0 %169
    %172 = vst.msk [vmem:[#allocation10] sm:$0xff] %vm126, %v170
    // Predicated region
    $region38: #{tpu_custom_call.1} parent=1 // pred_check
      _
    $region39: #{tpu_custom_call.1} parent=1 // pred_check_branch
      %174 = sbr.rel (0) target = $region41
    $region40: #{tpu_custom_call.1} parent=1 // pred_region
      %176 = vsyncadd [#allocation4], 0
      %s178 = sshll.u32 [#allocation10], 4
      %s179 = int_to_ptr.vmem [resolvable:$true] %s178
      %s180 = sshll.u32 %s5, 4
      %s181 = int_to_ptr.hbm [resolvable:$true] %s180
      %183 = dma.vmem_to_hbm [thread:$0]  %s179, 128, %s181, [#allocation4]
    $region41: #{tpu_custom_call.1} parent=1 // pred_fallthru
      _
    // Predicated region
    $region42: #{tpu_custom_call.1} parent=1 // pred_check
      _
    $region43: #{tpu_custom_call.1} parent=1 // pred_check_branch
      %185 = sbr.rel (0) target = $region45
    $region44: #{tpu_custom_call.1} parent=1 // pred_region
      %187 = dma.done [#allocation4], 128
    $region45: #{tpu_custom_call.1} parent=1 // pred_fallthru
      _
    %188 = vsyncpa [#allocation3], 1
    %189 = vsyncpa [#allocation6], 1
    %190 = vsyncpa [#allocation9], 1
    %191 = vsyncpa [#allocation4], 1

</llo_original>
